<compile_context>
chip_gen: v6e
topology: v6e:2x2x1
jax: 0.10.0
libtpu: 0.0.40
codegen_flags: <defaults>
</compile_context>

<pallas_src>
import jax
import jax.numpy as jnp
from jax.experimental import pallas as pl
from jax.experimental.pallas import tpu as pltpu

NEG_SLOPE = 0.01      # nn.LeakyReLU default
_NEG_BIG = -1e30      # bias for padded logit columns -> exp underflows to 0
_TM_CAP = 512         # max rows per batch tile (~2-3 MiB VMEM incl. 2x buffering)


def _round_up(x, m):
    return (x + m - 1) // m * m


def _leaky_relu(x):
    return jnp.where(x > 0, x, NEG_SLOPE * x)


def deep_model_kernel(x_ref, w1_ref, b1_ref, w2_ref, b2_ref, w3_ref, b3_ref,
                      o_ref):
    # bf16 MXU operands (cast on-tile, hidden under the matmuls), f32 accumulate.
    x = x_ref[...].astype(jnp.bfloat16)
    h1 = jnp.dot(x, w1_ref[...], preferred_element_type=jnp.float32)
    h1 = _leaky_relu(h1 + b1_ref[...])
    h2 = jnp.dot(h1.astype(jnp.bfloat16), w2_ref[...],
                 preferred_element_type=jnp.float32)
    h2 = _leaky_relu(h2 + b2_ref[...])
    logits = jnp.dot(h2.astype(jnp.bfloat16), w3_ref[...],
                     preferred_element_type=jnp.float32)
    logits = logits + b3_ref[...]            # padded cols carry -1e30 -> prob 0
    # Numerically stable softmax, all f32. Exact divide (not approx reciprocal)
    # so rows sum to 1 up to the final bf16 store rounding.
    m = jnp.max(logits, axis=-1, keepdims=True)
    e = jnp.exp(logits - m)
    denom = jnp.sum(e, axis=-1, keepdims=True)
    o_ref[...] = (e / denom).astype(o_ref.dtype)


def prepare_params(params):
    """One-time conversion of f32 (in,out) Linear params into kernel layout:
    bf16 matmul weights, f32 (1,H) biases, class dim padded to 128 lanes
    (zero weights + -1e30 bias => exactly-zero probability in padded columns).
    Call once; reuse the result for every forward call."""
    w1, b1, w2, b2, w3, b3 = params
    num_classes = w3.shape[1]
    c_pad = _round_up(num_classes, 128)
    if c_pad != num_classes:
        w3 = jnp.pad(w3, ((0, 0), (0, c_pad - num_classes)))
        b3 = jnp.pad(b3, ((0, 0), (0, c_pad - num_classes)),
                     constant_values=_NEG_BIG)
    return {
        "w1": w1.astype(jnp.bfloat16), "b1": b1.astype(jnp.float32),
        "w2": w2.astype(jnp.bfloat16), "b2": b2.astype(jnp.float32),
        "w3": w3.astype(jnp.bfloat16), "b3": b3.astype(jnp.float32),
        "num_classes": num_classes,
    }


def _pick_batch_tiling(B):
    """Return (TM, B_pad).

    Small B: one full-size tile (block shape == array shape, no padding pass).
    Large B: an even number of 16-row-aligned tiles capped at _TM_CAP rows so
    v7x's two TensorCores split the 'parallel' batch axis with balance and the
    per-grid-step overhead is amortized."""
    if B <= 256:
        return B, B
    n = max(2, -(-B // _TM_CAP))
    if n % 2:
        n += 1                       # even tile count -> balanced megacore split
    tm = _round_up(-(-B // n), 16)   # 16-row multiple (bf16 sublane packing)
    return tm, n * tm


def deep_model_forward(x, prepared, *, keep_padding=False):
    """x: (B, D_in) f32 -> softmax probabilities.

    keep_padding=False: returns (B, num_classes) bf16 (wrapper slice).
    keep_padding=True : returns the raw (B_pad, C_pad) bf16 kernel output; rows
                        >= B and columns >= num_classes are padding (padded
                        columns are exactly zero probability)."""
    w1, b1 = prepared["w1"], prepared["b1"]
    w2, b2 = prepared["w2"], prepared["b2"]
    w3, b3 = prepared["w3"], prepared["b3"]
    num_classes = prepared["num_classes"]

    B, d_in = x.shape
    h1 = w1.shape[1]
    h2 = w2.shape[1]
    c_pad = w3.shape[1]

    tm, b_pad = _pick_batch_tiling(B)
    if b_pad != B:
        # Only hit when B > 256 and B is not an exact multiple of the tile size.
        x = jnp.pad(x, ((0, b_pad - B), (0, 0)))

    grid = (b_pad // tm,)
    resident = lambda a: pl.BlockSpec(a.shape, lambda i: (0, 0))

    cost = pl.CostEstimate(
        flops=2 * b_pad * (d_in * h1 + h1 * h2 + h2 * c_pad),
        transcendentals=b_pad * c_pad,                        # exp
        bytes_accessed=(x.size * 4                            # f32 x read
                        + (w1.size + w2.size + w3.size) * 2   # bf16 weights
                        + (b1.size + b2.size + b3.size) * 4   # f32 biases
                        + b_pad * c_pad * 2),                 # bf16 output
    )

    out = pl.pallas_call(
        deep_model_kernel,
        out_shape=jax.ShapeDtypeStruct((b_pad, c_pad), jnp.bfloat16),
        grid=grid,
        in_specs=[
            pl.BlockSpec((tm, d_in), lambda i: (i, 0)),   # x batch tile (f32)
            resident(w1), resident(b1),                   # VMEM-resident params
            resident(w2), resident(b2),
            resident(w3), resident(b3),
        ],
        out_specs=pl.BlockSpec((tm, c_pad), lambda i: (i, 0)),
        compiler_params=pltpu.CompilerParams(
            dimension_semantics=("parallel",)),
        cost_estimate=cost,
    )(x, w1, b1, w2, b2, w3, b3)

    if keep_padding:
        return out
    return out[:B, :num_classes]


def init_params(key, input_shape, class_shape):
    """Deterministic f32 init; weights stored as (in, out) for x @ W."""
    k1, k2, k3, k4, k5, k6 = jax.random.split(key, 6)

    def linear(kw, kb, fan_in, fan_out):
        bound = 1.0 / jnp.sqrt(fan_in)   # PyTorch-default-like uniform init
        w = jax.random.uniform(kw, (fan_in, fan_out), jnp.float32,
                               -bound, bound)
        b = jax.random.uniform(kb, (1, fan_out), jnp.float32, -bound, bound)
        return w, b

    w1, b1 = linear(k1, k2, input_shape, 256)
    w2, b2 = linear(k3, k4, 256, 128)
    w3, b3 = linear(k5, k6, 128, class_shape)
    return (w1, b1, w2, b2, w3, b3)


def _reference_forward(x, params):
    """Pure-JAX f32 reference matching the PyTorch module."""
    w1, b1, w2, b2, w3, b3 = params
    h1 = _leaky_relu(x @ w1 + b1)
    h2 = _leaky_relu(h1 @ w2 + b2)
    return jax.nn.softmax(h2 @ w3 + b3, axis=-1)


if __name__ == "__main__":
    input_shape = 32   # features
    class_shape = 10   # classes
    batch = 8

    key = jax.random.PRNGKey(0)
    kx, kp = jax.random.split(key)
    x = jax.random.normal(kx, (batch, input_shape), jnp.float32)
    params = init_params(kp, input_shape, class_shape)
    prepared = prepare_params(params)   # one-time bf16 / padding conversion

    out = deep_model_forward(x, prepared)
    out = jax.block_until_ready(out)

    assert out.shape == (batch, class_shape)
    out_f32 = out.astype(jnp.float32)
    # Rows sum to 1 up to bf16 store rounding (~4e-3 relative per element).
    assert jnp.allclose(jnp.sum(out_f32, axis=-1), 1.0, atol=2e-2)
    # Loose tolerance: bf16 matmul operands + bf16 output store vs f32 reference.
    ref = _reference_forward(x, params)
    assert jnp.allclose(out_f32, ref, atol=2e-2, rtol=2e-2)
    print("KERNEL_OK")
</pallas_src>

<mosaic_0001>
module attributes {stable_mosaic.version = 11 : i64} {
  func.func @deep_model_kernel(%arg0: i32, %arg1: memref<8x32xf32, #tpu.memory_space<vmem>>, %arg2: memref<32x256xbf16, #tpu.memory_space<vmem>>, %arg3: memref<1x256xf32, #tpu.memory_space<vmem>>, %arg4: memref<256x128xbf16, #tpu.memory_space<vmem>>, %arg5: memref<1x128xf32, #tpu.memory_space<vmem>>, %arg6: memref<128x128xbf16, #tpu.memory_space<vmem>>, %arg7: memref<1x128xf32, #tpu.memory_space<vmem>>, %arg8: memref<8x128xbf16, #tpu.memory_space<vmem>>) attributes {dimension_semantics = [#tpu.dimension_semantics<parallel>], iteration_bounds = array<i64: 1>, scalar_prefetch = 0 : i64, scratch_operands = 0 : i64, tpu.core_type = #tpu.core_type<tc>, window_params = [{transform_indices = @transform_0, window_bounds = array<i64: 8, 32>}, {pipeline_mode = #tpu.pipeline_mode<synchronous>, transform_indices = @transform_1, window_bounds = array<i64: 32, 256>}, {pipeline_mode = #tpu.pipeline_mode<synchronous>, transform_indices = @transform_2, window_bounds = array<i64: 1, 256>}, {pipeline_mode = #tpu.pipeline_mode<synchronous>, transform_indices = @transform_3, window_bounds = array<i64: 256, 128>}, {pipeline_mode = #tpu.pipeline_mode<synchronous>, transform_indices = @transform_4, window_bounds = array<i64: 1, 128>}, {pipeline_mode = #tpu.pipeline_mode<synchronous>, transform_indices = @transform_5, window_bounds = array<i64: 128, 128>}, {pipeline_mode = #tpu.pipeline_mode<synchronous>, transform_indices = @transform_6, window_bounds = array<i64: 1, 128>}, {transform_indices = @transform_7, window_bounds = array<i64: 8, 128>}]} {
    %c0 = arith.constant 0 : index
    %c0_0 = arith.constant 0 : index
    %0 = vector.load %arg1[%c0, %c0_0] : memref<8x32xf32, #tpu.memory_space<vmem>>, vector<8x32xf32>
    %1 = arith.truncf %0 : vector<8x32xf32> to vector<8x32xbf16>
    %c0_1 = arith.constant 0 : index
    %c0_2 = arith.constant 0 : index
    %2 = vector.load %arg2[%c0_1, %c0_2] : memref<32x256xbf16, #tpu.memory_space<vmem>>, vector<32x256xbf16>
    %cst = arith.constant dense<0.000000e+00> : vector<8x256xf32>
    %3 = tpu.matmul %1, %2, %cst {dimension_numbers = #tpu.dot_dimension_numbers<[1], [0], [0], [1], [0, 0, 1, 1], [], []>} : vector<8x32xbf16>, vector<32x256xbf16>, vector<8x256xf32> -> vector<8x256xf32>
    %c0_3 = arith.constant 0 : index
    %c0_4 = arith.constant 0 : index
    %4 = vector.load %arg3[%c0_3, %c0_4] : memref<1x256xf32, #tpu.memory_space<vmem>>, vector<1x256xf32>
    %5 = vector.broadcast %4 : vector<1x256xf32> to vector<8x256xf32>
    %6 = arith.addf %3, %5 : vector<8x256xf32>
    %cst_5 = arith.constant 0.000000e+00 : f32
    %7 = vector.broadcast %cst_5 : f32 to vector<8x256xf32>
    %8 = arith.cmpf ogt, %6, %7 : vector<8x256xf32>
    %cst_6 = arith.constant 0.00999999977 : f32
    %9 = vector.broadcast %cst_6 : f32 to vector<8x256xf32>
    %10 = arith.mulf %9, %6 : vector<8x256xf32>
    %11 = arith.select %8, %6, %10 : vector<8x256xi1>, vector<8x256xf32>
    %12 = arith.truncf %11 : vector<8x256xf32> to vector<8x256xbf16>
    %c0_7 = arith.constant 0 : index
    %c0_8 = arith.constant 0 : index
    %13 = vector.load %arg4[%c0_7, %c0_8] : memref<256x128xbf16, #tpu.memory_space<vmem>>, vector<256x128xbf16>
    %cst_9 = arith.constant dense<0.000000e+00> : vector<8x128xf32>
    %14 = tpu.matmul %12, %13, %cst_9 {dimension_numbers = #tpu.dot_dimension_numbers<[1], [0], [0], [1], [0, 0, 1, 1], [], []>} : vector<8x256xbf16>, vector<256x128xbf16>, vector<8x128xf32> -> vector<8x128xf32>
    %c0_10 = arith.constant 0 : index
    %c0_11 = arith.constant 0 : index
    %15 = vector.load %arg5[%c0_10, %c0_11] : memref<1x128xf32, #tpu.memory_space<vmem>>, vector<1x128xf32>
    %16 = vector.broadcast %15 : vector<1x128xf32> to vector<8x128xf32>
    %17 = arith.addf %14, %16 : vector<8x128xf32>
    %cst_12 = arith.constant 0.000000e+00 : f32
    %18 = vector.broadcast %cst_12 : f32 to vector<8x128xf32>
    %19 = arith.cmpf ogt, %17, %18 : vector<8x128xf32>
    %cst_13 = arith.constant 0.00999999977 : f32
    %20 = vector.broadcast %cst_13 : f32 to vector<8x128xf32>
    %21 = arith.mulf %20, %17 : vector<8x128xf32>
    %22 = arith.select %19, %17, %21 : vector<8x128xi1>, vector<8x128xf32>
    %23 = arith.truncf %22 : vector<8x128xf32> to vector<8x128xbf16>
    %c0_14 = arith.constant 0 : index
    %c0_15 = arith.constant 0 : index
    %24 = vector.load %arg6[%c0_14, %c0_15] : memref<128x128xbf16, #tpu.memory_space<vmem>>, vector<128x128xbf16>
    %cst_16 = arith.constant dense<0.000000e+00> : vector<8x128xf32>
    %25 = tpu.matmul %23, %24, %cst_16 {dimension_numbers = #tpu.dot_dimension_numbers<[1], [0], [0], [1], [0, 0, 1, 1], [], []>} : vector<8x128xbf16>, vector<128x128xbf16>, vector<8x128xf32> -> vector<8x128xf32>
    %c0_17 = arith.constant 0 : index
    %c0_18 = arith.constant 0 : index
    %26 = vector.load %arg7[%c0_17, %c0_18] : memref<1x128xf32, #tpu.memory_space<vmem>>, vector<1x128xf32>
    %27 = vector.broadcast %26 : vector<1x128xf32> to vector<8x128xf32>
    %28 = arith.addf %25, %27 : vector<8x128xf32>
    %cst_19 = arith.constant dense<0xFF800000> : vector<8xf32>
    %29 = vector.multi_reduction <maximumf>, %28, %cst_19 [1] : vector<8x128xf32> to vector<8xf32>
    %30 = vector.shape_cast %29 : vector<8xf32> to vector<8x1xf32>
    %31 = vector.broadcast %30 : vector<8x1xf32> to vector<8x128xf32>
    %32 = arith.subf %28, %31 : vector<8x128xf32>
    %33 = math.exp %32 : vector<8x128xf32>
    %cst_20 = arith.constant dense<0.000000e+00> : vector<8xf32>
    %34 = vector.multi_reduction <add>, %33, %cst_20 [1] : vector<8x128xf32> to vector<8xf32>
    %35 = vector.shape_cast %34 : vector<8xf32> to vector<8x1xf32>
    %36 = vector.broadcast %35 : vector<8x1xf32> to vector<8x128xf32>
    %37 = arith.divf %33, %36 : vector<8x128xf32>
    %38 = arith.truncf %37 : vector<8x128xf32> to vector<8x128xbf16>
    %c0_21 = arith.constant 0 : index
    %c0_22 = arith.constant 0 : index
    %39 = vector.load %arg8[%c0_21, %c0_22] : memref<8x128xbf16, #tpu.memory_space<vmem>>, vector<8x128xbf16>
    tpu.vector_store %arg8[%c0_21, %c0_22], %38 {strides = array<i32>} : memref<8x128xbf16, #tpu.memory_space<vmem>>, vector<8x128xbf16>,
    return
  }
  func.func @transform_0(%arg0: i32) -> (i32, i32) {
    %c0_i32 = arith.constant 0 : i32
    %c0_i32_0 = arith.constant 0 : i32
    return %arg0, %c0_i32 : i32, i32
  }
  func.func @transform_1(%arg0: i32) -> (i32, i32) {
    %c0_i32 = arith.constant 0 : i32
    %c0_i32_0 = arith.constant 0 : i32
    %c0_i32_1 = arith.constant 0 : i32
    return %c0_i32, %c0_i32_0 : i32, i32
  }
  func.func @transform_2(%arg0: i32) -> (i32, i32) {
    %c0_i32 = arith.constant 0 : i32
    %c0_i32_0 = arith.constant 0 : i32
    %c0_i32_1 = arith.constant 0 : i32
    return %c0_i32, %c0_i32_0 : i32, i32
  }
  func.func @transform_3(%arg0: i32) -> (i32, i32) {
    %c0_i32 = arith.constant 0 : i32
    %c0_i32_0 = arith.constant 0 : i32
    %c0_i32_1 = arith.constant 0 : i32
    return %c0_i32, %c0_i32_0 : i32, i32
  }
  func.func @transform_4(%arg0: i32) -> (i32, i32) {
    %c0_i32 = arith.constant 0 : i32
    %c0_i32_0 = arith.constant 0 : i32
    %c0_i32_1 = arith.constant 0 : i32
    return %c0_i32, %c0_i32_0 : i32, i32
  }
  func.func @transform_5(%arg0: i32) -> (i32, i32) {
    %c0_i32 = arith.constant 0 : i32
    %c0_i32_0 = arith.constant 0 : i32
    %c0_i32_1 = arith.constant 0 : i32
    return %c0_i32, %c0_i32_0 : i32, i32
  }
  func.func @transform_6(%arg0: i32) -> (i32, i32) {
    %c0_i32 = arith.constant 0 : i32
    %c0_i32_0 = arith.constant 0 : i32
    %c0_i32_1 = arith.constant 0 : i32
    return %c0_i32, %c0_i32_0 : i32, i32
  }
  func.func @transform_7(%arg0: i32) -> (i32, i32) {
    %c0_i32 = arith.constant 0 : i32
    %c0_i32_0 = arith.constant 0 : i32
    return %arg0, %c0_i32 : i32, i32
  }
}

</mosaic_0001>

<llo_original>
// kernel: tpu_custom_call.1
$region0: #{tpu_custom_call.1}
  #allocation0 [shape = 'u32[]', space=smem, size = 0x4, offset = 0x4, fixed_abs, tag = 'smem constant byte address 0x4 - core index']
  #allocation1 [shape = 'u32[144,128]{1,0:T(1,128)}', space=vmem, size = 0x12000, scoped, tag = 'internal scratch']
  %s0 = inlined_call_operand.hbm [shape: f32[8,32], index: 0, kind: input, shape index: {}]
  %s1 = inlined_call_operand.hbm [shape: bf16[32,256], index: 1, kind: input, shape index: {}]
  %s2 = inlined_call_operand.vmem [shape: f32[1,256], index: 2, kind: input, shape index: {}]
  %s3 = inlined_call_operand.hbm [shape: bf16[256,128], index: 3, kind: input, shape index: {}]
  %s4 = inlined_call_operand.vmem [shape: f32[1,128], index: 4, kind: input, shape index: {}]
  %s5 = inlined_call_operand.hbm [shape: bf16[128,128], index: 5, kind: input, shape index: {}]
  %s6 = inlined_call_operand.vmem [shape: f32[1,128], index: 6, kind: input, shape index: {}]
  %s7 = inlined_call_operand.hbm [shape: bf16[8,128], index: 7, kind: output, shape index: {}]
  %s8 = sld [smem:[#allocation0]]
  $region54: #{tpu_custom_call.1} parent=0
    _
  %s10 = ssub.s32 1, %s8
  %s11 = scalar_select 0, %s10, %s8
  $region1: #{tpu_custom_call.1} parent=0
    #allocation2 [shape = 'u8[4096]{0}', space=vmem, size = 0x1000, scoped, tag = 'input window, operand 0, single buffered']
    #allocation3 [shape = 's32[1]{0}', space=sflag, size = 0x4, scoped, tag = 'scoped memory for tpu_custom_call.1']
    #allocation4 [shape = 's32[1]{0}', space=sflag, size = 0x4, scoped, tag = 'scoped memory for tpu_custom_call.1']
    #allocation5 [shape = 'u8[16384]{0}', space=vmem, size = 0x4000, scoped, tag = 'input window, operand 1, single buffered']
    #allocation6 [shape = 's32[1]{0}', space=sflag, size = 0x4, scoped, tag = 'scoped memory for tpu_custom_call.1']
    #allocation7 [shape = 'u8[65536]{0}', space=vmem, size = 0x10000, scoped, tag = 'input window, operand 3, single buffered']
    #allocation8 [shape = 'u8[32768]{0}', space=vmem, size = 0x8000, scoped, tag = 'input window, operand 5, single buffered']
    #allocation9 [shape = 's32[1]{0}', space=sflag, size = 0x4, scoped, tag = 'scoped memory for tpu_custom_call.1']
    #allocation10 [shape = 'u8[2048]{0}', space=vmem, size = 0x800, scoped, tag = 'output window, operand 0, single buffered']
    %12 = vsyncpa [#allocation3], 0
    %13 = vsyncpa [#allocation6], 0
    %14 = vsyncpa [#allocation9], 0
    %15 = vsyncpa [#allocation4], 0
    // Predicated region
    $region2: #{tpu_custom_call.1} parent=1 // pred_check
      _
    $region3: #{tpu_custom_call.1} parent=1 // pred_check_branch
      %17 = sbr.rel (0) target = $region5
    $region4: #{tpu_custom_call.1} parent=1 // pred_region
      %s19 = ssub.s32 128, 128
      %20 = vsyncadd [#allocation3], %s19
      %s22 = sshll.u32 [#allocation2], 4
      %s23 = int_to_ptr.vmem [resolvable:$true] %s22
      %25 = dma.hbm_to_vmem [thread:$0]  %s0, 128, %s23, [#allocation3]
    $region5: #{tpu_custom_call.1} parent=1 // pred_fallthru
      _
    // Predicated region
    $region6: #{tpu_custom_call.1} parent=1 // pred_check
      _
    $region7: #{tpu_custom_call.1} parent=1 // pred_check_branch
      %27 = sbr.rel (0) target = $region9
    $region8: #{tpu_custom_call.1} parent=1 // pred_region
      %s29 = ssub.s32 512, 512
      %30 = vsyncadd [#allocation6], %s29
      %s31 = sshll.u32 [#allocation5], 4
      %s32 = int_to_ptr.vmem [resolvable:$true] %s31
      %37 = dma.hbm_to_vmem [thread:$0]  %s1, 512, %s32, [#allocation6], 128, 128, 8
    $region9: #{tpu_custom_call.1} parent=1 // pred_fallthru
      _
    // Predicated region
    $region10: #{tpu_custom_call.1} parent=1 // pred_check
      _
    $region11: #{tpu_custom_call.1} parent=1 // pred_check_branch
      %39 = sbr.rel (0) target = $region13
    $region12: #{tpu_custom_call.1} parent=1 // pred_region
      _
    $region13: #{tpu_custom_call.1} parent=1 // pred_fallthru
      _
    // Predicated region
    $region14: #{tpu_custom_call.1} parent=1 // pred_check
      _
    $region15: #{tpu_custom_call.1} parent=1 // pred_check_branch
      %41 = sbr.rel (0) target = $region17
    $region16: #{tpu_custom_call.1} parent=1 // pred_region
      %s43 = ssub.s32 2048, 2048
      %44 = vsyncadd [#allocation6], %s43
      %s45 = sshll.u32 [#allocation7], 4
      %s46 = int_to_ptr.vmem [resolvable:$true] %s45
      %51 = dma.hbm_to_vmem [thread:$0]  %s3, 2048, %s46, [#allocation6], 64, 64, 4
    $region17: #{tpu_custom_call.1} parent=1 // pred_fallthru
      _
    // Predicated region
    $region18: #{tpu_custom_call.1} parent=1 // pred_check
      _
    $region19: #{tpu_custom_call.1} parent=1 // pred_check_branch
      %53 = sbr.rel (0) target = $region21
    $region20: #{tpu_custom_call.1} parent=1 // pred_region
      _
    $region21: #{tpu_custom_call.1} parent=1 // pred_fallthru
      _
    // Predicated region
    $region22: #{tpu_custom_call.1} parent=1 // pred_check
      _
    $region23: #{tpu_custom_call.1} parent=1 // pred_check_branch
      %55 = sbr.rel (0) target = $region25
    $region24: #{tpu_custom_call.1} parent=1 // pred_region
      %s57 = ssub.s32 1024, 1024
      %58 = vsyncadd [#allocation9], %s57
      %s59 = sshll.u32 [#allocation8], 4
      %s60 = int_to_ptr.vmem [resolvable:$true] %s59
      %65 = dma.hbm_to_vmem [thread:$0]  %s5, 1024, %s60, [#allocation9], 64, 64, 4
    $region25: #{tpu_custom_call.1} parent=1 // pred_fallthru
      _
    // Predicated region
    $region26: #{tpu_custom_call.1} parent=1 // pred_check
      _
    $region27: #{tpu_custom_call.1} parent=1 // pred_check_branch
      %67 = sbr.rel (0) target = $region29
    $region28: #{tpu_custom_call.1} parent=1 // pred_region
      _
    $region29: #{tpu_custom_call.1} parent=1 // pred_fallthru
      _
    // Predicated region
    $region30: #{tpu_custom_call.1} parent=1 // pred_check
      _
    $region31: #{tpu_custom_call.1} parent=1 // pred_check_branch
      %69 = sbr.rel (0) target = $region33
    $region32: #{tpu_custom_call.1} parent=1 // pred_region
      %70 = dma.done [#allocation3], 128
    $region33: #{tpu_custom_call.1} parent=1 // pred_fallthru
      _
    // Predicated region
    $region34: #{tpu_custom_call.1} parent=1 // pred_check
      _
    $region35: #{tpu_custom_call.1} parent=1 // pred_check_branch
      %72 = sbr.rel (0) target = $region37
    $region36: #{tpu_custom_call.1} parent=1 // pred_region
      %73 = dma.done [#allocation6], 512
    $region37: #{tpu_custom_call.1} parent=1 // pred_fallthru
      _
    // Predicated region
    $region38: #{tpu_custom_call.1} parent=1 // pred_check
      _
    $region39: #{tpu_custom_call.1} parent=1 // pred_check_branch
      %75 = sbr.rel (0) target = $region41
    $region40: #{tpu_custom_call.1} parent=1 // pred_region
      %76 = dma.done [#allocation6], 2048
    $region41: #{tpu_custom_call.1} parent=1 // pred_fallthru
      _
    // Predicated region
    $region42: #{tpu_custom_call.1} parent=1 // pred_check
      _
    $region43: #{tpu_custom_call.1} parent=1 // pred_check_branch
      %78 = sbr.rel (0) target = $region45
    $region44: #{tpu_custom_call.1} parent=1 // pred_region
      %79 = dma.done [#allocation9], 1024
    $region45: #{tpu_custom_call.1} parent=1 // pred_fallthru
      _
    %v81 = vld [vmem:[#allocation2] sm:$0xff]
    %v82 = vpack.c.bf16 %v81, %v81
    %v83 = vld [vmem:[#allocation5] sm:$0xff]
    %v84 = vld [vmem:[#allocation5 + $0x8] sm:$0xff]
    %v85 = vld [vmem:[#allocation5 + $0x10] sm:$0xff]
    %v86 = vld [vmem:[#allocation5 + $0x18] sm:$0xff]
    %v87 = vld [vmem:[%s2] sm:$0x3]
    %v89 = vlaneseq
    %v90 = vshrl.u32 %v89, 7
    %v91 = vsub.s32 0, %v90
    %v92 = vrot.slane %v87, %v91
    %v93 = vlaneseq
    %v94 = vshrl.u32 %v93, 7
    %v95 = vsub.s32 1, %v94
    %v96 = vrot.slane %v87, %v95
    %v103 = vunpack.c.l.b16 %v83
    %v104 = vunpack.c.h.b16 %v83
    %v105 = vunpack.c.l.b16 %v84
    %v106 = vunpack.c.h.b16 %v84
    %v107 = vunpack.c.l.b16 %v85
    %v108 = vunpack.c.h.b16 %v85
    %v109 = vunpack.c.l.b16 %v86
    %v110 = vunpack.c.h.b16 %v86
    %v111 = vpack.c.b16 %v105, %v103
    %v112 = vpack.c.b16 %v106, %v104
    %v113 = vpack.c.b16 %v109, %v107
    %v114 = vpack.c.b16 %v110, %v108
    %vm119 = vcmask 261120
    %v121 = vsel %vm119, %v82, 0
    %123 = vmatprep.subr.bf16.mxu0 0
    %124 = vmatpush1.bf16.msra.mxu0 0
    %125 = vmatprep.subr.bf16.mxu0 0
    %126 = vmatpush1.bf16.msra.mxu0 0
    %127 = vmatprep.subr.bf16.mxu0 0
    %128 = vmatpush1.bf16.msra.mxu0 0
    %129 = vmatprep.subr.bf16.mxu0 0
    %130 = vmatpush1.bf16.msra.mxu0 0
    %131 = vmatprep.subr.bf16.mxu0 0
    %132 = vmatpush1.bf16.msra.mxu0 0
    %133 = vmatprep.subr.bf16.mxu0 0
    %134 = vmatpush1.bf16.msra.mxu0 0
    %135 = vmatprep.subr.bf16.mxu0 %v114
    %136 = vmatpush1.bf16.msra.mxu0 %v113
    %137 = vmatprep.subr.bf16.mxu0 %v112
    %138 = vmatpush1.bf16.msra.mxu0 %v111
    %139 = vmatprep.subr.bf16.mxu0 0
    %140 = vmatpush2.bf16.msra.mxu0 0
    %141 = vmatprep.subr.bf16.mxu0 0
    %142 = vmatpush2.bf16.msra.mxu0 0
    %143 = vmatprep.subr.bf16.mxu0 0
    %144 = vmatpush2.bf16.msra.mxu0 0
    %145 = vmatprep.subr.bf16.mxu0 0
    %146 = vmatpush2.bf16.msra.mxu0 0
    %147 = vmatprep.subr.bf16.mxu0 0
    %148 = vmatpush2.bf16.msra.mxu0 0
    %149 = vmatprep.subr.bf16.mxu0 0
    %150 = vmatpush2.bf16.msra.mxu0 0
    %151 = vmatprep.subr.bf16.mxu0 0
    %152 = vmatpush2.bf16.msra.mxu0 0
    %153 = vmatprep.subr.bf16.mxu0 0
    %154 = vmatpush2.bf16.msra.mxu0 0
    %155 = vmatprep.mubr.bf16.mxu0 0
    %156 = vmatmul.mubr.bf16.gmra.mxu0 %v121
    %v157 = vpop.f32.mrf.mxu0
    %v158 = vadd.f32 %v92, %v157
    %v159 = vpop.f32.mrf.mxu0
    %v160 = vadd.f32 %v96, %v159
    %v161 = vpop.f32.mrf.mxu0
    %v162 = vpop.f32.mrf.mxu0
    %163 = vdwg.mxu0
    %vm164 = vcmp.gt.f32.partialorder %v158, 0.0
    %vm165 = vcmp.gt.f32.partialorder %v160, 0.0
    %v166 = vmul.f32 %v158, 0.01
    %v167 = vmul.f32 %v160, 0.01
    %v168 = vsel %vm164, %v158, %v166
    %v169 = vsel %vm165, %v160, %v167
    %v170 = vpack.c.bf16 %v168, %v168
    %v171 = vpack.c.bf16 %v169, %v169
    %v172 = vld [vmem:[#allocation7] sm:$0xf]
    %v173 = vld [vmem:[#allocation7 + $0x4] sm:$0xf]
    %v174 = vld [vmem:[#allocation7 + $0x8] sm:$0xf]
    %v175 = vld [vmem:[#allocation7 + $0xc] sm:$0xf]
    %v176 = vld [vmem:[#allocation7 + $0x10] sm:$0xf]
    %v177 = vld [vmem:[#allocation7 + $0x14] sm:$0xf]
    %v178 = vld [vmem:[#allocation7 + $0x18] sm:$0xf]
    %v179 = vld [vmem:[#allocation7 + $0x1c] sm:$0xf]
    %v180 = vld [vmem:[#allocation7 + $0x20] sm:$0xf]
    %v181 = vld [vmem:[#allocation7 + $0x24] sm:$0xf]
    %v182 = vld [vmem:[#allocation7 + $0x28] sm:$0xf]
    %v183 = vld [vmem:[#allocation7 + $0x2c] sm:$0xf]
    %v184 = vld [vmem:[#allocation7 + $0x30] sm:$0xf]
    %v185 = vld [vmem:[#allocation7 + $0x34] sm:$0xf]
    %v186 = vld [vmem:[#allocation7 + $0x38] sm:$0xf]
    %v187 = vld [vmem:[#allocation7 + $0x3c] sm:$0xf]
    %v188 = vld [vmem:[#allocation7 + $0x40] sm:$0xf]
    %v189 = vld [vmem:[#allocation7 + $0x44] sm:$0xf]
    %v190 = vld [vmem:[#allocation7 + $0x48] sm:$0xf]
    %v191 = vld [vmem:[#allocation7 + $0x4c] sm:$0xf]
    %v192 = vld [vmem:[#allocation7 + $0x50] sm:$0xf]
    %v193 = vld [vmem:[#allocation7 + $0x54] sm:$0xf]
    %v194 = vld [vmem:[#allocation7 + $0x58] sm:$0xf]
    %v195 = vld [vmem:[#allocation7 + $0x5c] sm:$0xf]
    %v196 = vld [vmem:[#allocation7 + $0x60] sm:$0xf]
    %v197 = vld [vmem:[#allocation7 + $0x64] sm:$0xf]
    %v198 = vld [vmem:[#allocation7 + $0x68] sm:$0xf]
    %v199 = vld [vmem:[#allocation7 + $0x6c] sm:$0xf]
    %v200 = vld [vmem:[#allocation7 + $0x70] sm:$0xf]
    %v201 = vld [vmem:[#allocation7 + $0x74] sm:$0xf]
    %v202 = vld [vmem:[#allocation7 + $0x78] sm:$0xf]
    %v203 = vld [vmem:[#allocation7 + $0x7c] sm:$0xf]
    %v204 = vld [vmem:[%s4] sm:$0x1]
    %v206 = vlaneseq
    %v207 = vshrl.u32 %v206, 7
    %v208 = vsub.s32 0, %v207
    %v209 = vrot.slane %v204, %v208
    %v243 = vunpack.c.l.b16 %v172
    %v244 = vunpack.c.l.b16 %v173
    %v245 = vunpack.c.l.b16 %v174
    %v246 = vunpack.c.l.b16 %v175
    %v247 = vunpack.c.l.b16 %v176
    %v248 = vunpack.c.l.b16 %v177
    %v249 = vunpack.c.l.b16 %v178
    %v250 = vunpack.c.l.b16 %v179
    %v251 = vunpack.c.l.b16 %v180
    %v252 = vunpack.c.l.b16 %v181
    %v253 = vunpack.c.l.b16 %v182
    %v254 = vunpack.c.l.b16 %v183
    %v255 = vunpack.c.l.b16 %v184
    %v256 = vunpack.c.l.b16 %v185
    %v257 = vunpack.c.l.b16 %v186
    %v258 = vunpack.c.l.b16 %v187
    %v259 = vunpack.c.l.b16 %v188
    %v260 = vunpack.c.l.b16 %v189
    %v261 = vunpack.c.l.b16 %v190
    %v262 = vunpack.c.l.b16 %v191
    %v263 = vunpack.c.l.b16 %v192
    %v264 = vunpack.c.l.b16 %v193
    %v265 = vunpack.c.l.b16 %v194
    %v266 = vunpack.c.l.b16 %v195
    %v267 = vunpack.c.l.b16 %v196
    %v268 = vunpack.c.l.b16 %v197
    %v269 = vunpack.c.l.b16 %v198
    %v270 = vunpack.c.l.b16 %v199
    %v271 = vunpack.c.l.b16 %v200
    %v272 = vunpack.c.l.b16 %v201
    %v273 = vunpack.c.l.b16 %v202
    %v274 = vunpack.c.l.b16 %v203
    %v275 = vpack.c.b16 %v244, %v243
    %v276 = vpack.c.b16 %v246, %v245
    %v277 = vpack.c.b16 %v248, %v247
    %v278 = vpack.c.b16 %v250, %v249
    %v279 = vpack.c.b16 %v252, %v251
    %v280 = vpack.c.b16 %v254, %v253
    %v281 = vpack.c.b16 %v256, %v255
    %v282 = vpack.c.b16 %v258, %v257
    %v283 = vpack.c.b16 %v260, %v259
    %v284 = vpack.c.b16 %v262, %v261
    %v285 = vpack.c.b16 %v264, %v263
    %v286 = vpack.c.b16 %v266, %v265
    %v287 = vpack.c.b16 %v268, %v267
    %v288 = vpack.c.b16 %v270, %v269
    %v289 = vpack.c.b16 %v272, %v271
    %v290 = vpack.c.b16 %v274, %v273
    %307 = vmatprep.subr.bf16.mxu0 0
    %308 = vmatpush1.bf16.msra.mxu0 %v282
    %309 = vmatprep.subr.bf16.mxu0 0
    %310 = vmatpush1.bf16.msra.mxu0 %v281
    %311 = vmatprep.subr.bf16.mxu0 0
    %312 = vmatpush1.bf16.msra.mxu0 %v280
    %313 = vmatprep.subr.bf16.mxu0 0
    %314 = vmatpush1.bf16.msra.mxu0 %v279
    %315 = vmatprep.subr.bf16.mxu0 0
    %316 = vmatpush1.bf16.msra.mxu0 %v278
    %317 = vmatprep.subr.bf16.mxu0 0
    %318 = vmatpush1.bf16.msra.mxu0 %v277
    %319 = vmatprep.subr.bf16.mxu0 0
    %320 = vmatpush1.bf16.msra.mxu0 %v276
    %321 = vmatprep.subr.bf16.mxu0 0
    %322 = vmatpush1.bf16.msra.mxu0 %v275
    %323 = vmatprep.subr.bf16.mxu0 0
    %324 = vmatpush2.bf16.msra.mxu0 %v290
    %325 = vmatprep.subr.bf16.mxu0 0
    %326 = vmatpush2.bf16.msra.mxu0 %v289
    %327 = vmatprep.subr.bf16.mxu0 0
    %328 = vmatpush2.bf16.msra.mxu0 %v288
    %329 = vmatprep.subr.bf16.mxu0 0
    %330 = vmatpush2.bf16.msra.mxu0 %v287
    %331 = vmatprep.subr.bf16.mxu0 0
    %332 = vmatpush2.bf16.msra.mxu0 %v286
    %333 = vmatprep.subr.bf16.mxu0 0
    %334 = vmatpush2.bf16.msra.mxu0 %v285
    %335 = vmatprep.subr.bf16.mxu0 0
    %336 = vmatpush2.bf16.msra.mxu0 %v284
    %337 = vmatprep.subr.bf16.mxu0 0
    %338 = vmatpush2.bf16.msra.mxu0 %v283
    %339 = vmatprep.mubr.bf16.mxu0 %v171
    %340 = vmatmul.mubr.bf16.gmra.mxu0 %v170
    %v341 = vpop.f32.mrf.mxu0
    %v342 = vadd.f32 %v209, %v341
    %v343 = vpop.f32.mrf.mxu0
    %v344 = vpop.f32.mrf.mxu0
    %v345 = vpop.f32.mrf.mxu0
    %346 = vdwg.mxu0
    %vm347 = vcmp.gt.f32.partialorder %v342, 0.0
    %v348 = vmul.f32 %v342, 0.01
    %v349 = vsel %vm347, %v342, %v348
    %v350 = vpack.c.bf16 %v349, %v349
    %v351 = vld [vmem:[#allocation8] sm:$0xf]
    %v352 = vld [vmem:[#allocation8 + $0x4] sm:$0xf]
    %v353 = vld [vmem:[#allocation8 + $0x8] sm:$0xf]
    %v354 = vld [vmem:[#allocation8 + $0xc] sm:$0xf]
    %v355 = vld [vmem:[#allocation8 + $0x10] sm:$0xf]
    %v356 = vld [vmem:[#allocation8 + $0x14] sm:$0xf]
    %v357 = vld [vmem:[#allocation8 + $0x18] sm:$0xf]
    %v358 = vld [vmem:[#allocation8 + $0x1c] sm:$0xf]
    %v359 = vld [vmem:[#allocation8 + $0x20] sm:$0xf]
    %v360 = vld [vmem:[#allocation8 + $0x24] sm:$0xf]
    %v361 = vld [vmem:[#allocation8 + $0x28] sm:$0xf]
    %v362 = vld [vmem:[#allocation8 + $0x2c] sm:$0xf]
    %v363 = vld [vmem:[#allocation8 + $0x30] sm:$0xf]
    %v364 = vld [vmem:[#allocation8 + $0x34] sm:$0xf]
    %v365 = vld [vmem:[#allocation8 + $0x38] sm:$0xf]
    %v366 = vld [vmem:[#allocation8 + $0x3c] sm:$0xf]
    %v367 = vld [vmem:[%s6] sm:$0x1]
    %v369 = vlaneseq
    %v370 = vshrl.u32 %v369, 7
    %v371 = vsub.s32 0, %v370
    %v372 = vrot.slane %v367, %v371
    %v390 = vunpack.c.l.b16 %v351
    %v391 = vunpack.c.l.b16 %v352
    %v392 = vunpack.c.l.b16 %v353
    %v393 = vunpack.c.l.b16 %v354
    %v394 = vunpack.c.l.b16 %v355
    %v395 = vunpack.c.l.b16 %v356
    %v396 = vunpack.c.l.b16 %v357
    %v397 = vunpack.c.l.b16 %v358
    %v398 = vunpack.c.l.b16 %v359
    %v399 = vunpack.c.l.b16 %v360
    %v400 = vunpack.c.l.b16 %v361
    %v401 = vunpack.c.l.b16 %v362
    %v402 = vunpack.c.l.b16 %v363
    %v403 = vunpack.c.l.b16 %v364
    %v404 = vunpack.c.l.b16 %v365
    %v405 = vunpack.c.l.b16 %v366
    %v406 = vpack.c.b16 %v391, %v390
    %v407 = vpack.c.b16 %v393, %v392
    %v408 = vpack.c.b16 %v395, %v394
    %v409 = vpack.c.b16 %v397, %v396
    %v410 = vpack.c.b16 %v399, %v398
    %v411 = vpack.c.b16 %v401, %v400
    %v412 = vpack.c.b16 %v403, %v402
    %v413 = vpack.c.b16 %v405, %v404
    %422 = vmatprep.subr.bf16.mxu0 0
    %423 = vmatpush1.bf16.msra.mxu0 %v413
    %424 = vmatprep.subr.bf16.mxu0 0
    %425 = vmatpush1.bf16.msra.mxu0 %v412
    %426 = vmatprep.subr.bf16.mxu0 0
    %427 = vmatpush1.bf16.msra.mxu0 %v411
    %428 = vmatprep.subr.bf16.mxu0 0
    %429 = vmatpush1.bf16.msra.mxu0 %v410
    %430 = vmatprep.subr.bf16.mxu0 0
    %431 = vmatpush1.bf16.msra.mxu0 %v409
    %432 = vmatprep.subr.bf16.mxu0 0
    %433 = vmatpush1.bf16.msra.mxu0 %v408
    %434 = vmatprep.subr.bf16.mxu0 0
    %435 = vmatpush1.bf16.msra.mxu0 %v407
    %436 = vmatprep.subr.bf16.mxu0 0
    %437 = vmatpush1.bf16.msra.mxu0 %v406
    %438 = vmatprep.subr.bf16.mxu0 0
    %439 = vmatpush2.bf16.msra.mxu0 0
    %440 = vmatprep.subr.bf16.mxu0 0
    %441 = vmatpush2.bf16.msra.mxu0 0
    %442 = vmatprep.subr.bf16.mxu0 0
    %443 = vmatpush2.bf16.msra.mxu0 0
    %444 = vmatprep.subr.bf16.mxu0 0
    %445 = vmatpush2.bf16.msra.mxu0 0
    %446 = vmatprep.subr.bf16.mxu0 0
    %447 = vmatpush2.bf16.msra.mxu0 0
    %448 = vmatprep.subr.bf16.mxu0 0
    %449 = vmatpush2.bf16.msra.mxu0 0
    %450 = vmatprep.subr.bf16.mxu0 0
    %451 = vmatpush2.bf16.msra.mxu0 0
    %452 = vmatprep.subr.bf16.mxu0 0
    %453 = vmatpush2.bf16.msra.mxu0 0
    %454 = vmatprep.mubr.bf16.mxu0 0
    %455 = vmatmul.mubr.bf16.gmra.mxu0 %v350
    %v456 = vpop.f32.mrf.mxu0
    %v457 = vadd.f32 %v372, %v456
    %v458 = vpop.f32.mrf.mxu0
    %v459 = vpop.f32.mrf.mxu0
    %v460 = vpop.f32.mrf.mxu0
    %461 = vdwg.mxu0
    %462 = vmax.xlane.f32.xlu0 %v457
    %v463 = vpop.xlane.xlu0 %462
    %v464 = vsub.f32 %v457, %v463
    %v465 = vmul.f32 %v464, 1.442695
    %v466 = vpow.pop %v465
    %467 = vadd.xlane.f32.xlu0 %v466
    %v468 = vpop.xlane.xlu0 %467
    %v469 = vrcp.pop %v468
    %v470 = vmul.f32 %v466, %v469
    %v471 = vpack.c.bf16 %v470, %v470
    %472 = vst [vmem:[#allocation10] sm:$0xf] %v471
    // Predicated region
    $region46: #{tpu_custom_call.1} parent=1 // pred_check
      _
    $region47: #{tpu_custom_call.1} parent=1 // pred_check_branch
      %474 = sbr.rel (0) target = $region49
    $region48: #{tpu_custom_call.1} parent=1 // pred_region
      %s476 = ssub.s32 64, 64
      %477 = vsyncadd [#allocation4], %s476
      %s479 = sshll.u32 [#allocation10], 4
      %s480 = int_to_ptr.vmem [resolvable:$true] %s479
      %482 = dma.vmem_to_hbm [thread:$0]  %s480, 64, %s7, [#allocation4]
    $region49: #{tpu_custom_call.1} parent=1 // pred_fallthru
      _
    // Predicated region
    $region50: #{tpu_custom_call.1} parent=1 // pred_check
      _
    $region51: #{tpu_custom_call.1} parent=1 // pred_check_branch
      %484 = sbr.rel (0) target = $region53
    $region52: #{tpu_custom_call.1} parent=1 // pred_region
      %485 = dma.done [#allocation4], 64
    $region53: #{tpu_custom_call.1} parent=1 // pred_fallthru
      _
    %486 = vsyncpa [#allocation3], 1
    %487 = vsyncpa [#allocation6], 1
    %488 = vsyncpa [#allocation9], 1
    %489 = vsyncpa [#allocation4], 1

</llo_original>
